<compile_context>
chip_gen: v5e
topology: v5e:2x2
jax: 0.10.0
libtpu: 0.0.40
codegen_flags: <defaults>
</compile_context>

<pallas_src>
import functools

import numpy as np
import jax
import jax.numpy as jnp
from jax import lax
from jax.experimental import pallas as pl
from jax.experimental.pallas import tpu as pltpu


# ---------------------------------------------------------------------------
# Fused per-head kernel (grid axis = heads, "parallel").
#   xt_ref : (F, N)        node features, transposed (N on lanes)
#   w_ref  : (3*d_k, F)    packed [Wq_h ; Wk_h ; Wv_h] for this head
#   b_ref  : (3*d_k, 1)    packed bias for this head
#   e0/e1/g: (1, E) int32  edge source / dest / softmax-segment indices
#   att_ref, prods_ref : (1, E)    lane-dense row outputs for this head
#   v_ref  : (d_k, N)      per-head V, transposed
# ---------------------------------------------------------------------------
def _fused_attn_kernel(xt_ref, w_ref, b_ref, e0_ref, e1_ref, g_ref,
                       att_ref, v_ref, prods_ref, *, d_k, n_nodes):
    f32 = jnp.float32

    # --- fused QKV projection for this head: one MXU push ------------------
    qkv_t = jnp.dot(w_ref[...], xt_ref[...],
                    preferred_element_type=f32) + b_ref[...]          # (3*d_k, N)
    q_t = qkv_t[0 * d_k:1 * d_k, :]                                    # (d_k, N)
    k_t = qkv_t[1 * d_k:2 * d_k, :]                                    # (d_k, N)
    v_t = qkv_t[2 * d_k:3 * d_k, :]                                    # (d_k, N)
    v_ref[...] = v_t                                                   # lane-dense

    # --- per-edge gather of q[edge0], k[edge1] (exact one-hot MXU gather) ---
    node_ids = lax.broadcasted_iota(jnp.int32, (n_nodes, 1), 0)        # (N, 1)
    onehot_src = (node_ids == e0_ref[...]).astype(f32)                 # (N, E)
    onehot_dst = (node_ids == e1_ref[...]).astype(f32)                 # (N, E)
    src_t = jnp.dot(q_t, onehot_src, preferred_element_type=f32)       # (d_k, E)
    dst_t = jnp.dot(k_t, onehot_dst, preferred_element_type=f32)       # (d_k, E)

    # --- scaled-dot scores (lane-dense row) ---------------------------------
    scale = f32(1.0 / np.sqrt(d_k))
    prods_row = jnp.sum(src_t * dst_t, axis=0, keepdims=True) * scale  # (1, E)
    prods_ref[...] = prods_row

    # --- segment softmax over g (torch_geometric.utils.softmax semantics) ---
    # Per-node stats via (N, E) masked reduces, exact gather-back via one-hot.
    seg_mask = node_ids == g_ref[...]                                  # (N, E) bool
    seg_f = seg_mask.astype(f32)                                       # (N, E)
    neg = f32(-1e30)
    seg_max = jnp.max(jnp.where(seg_mask, prods_row, neg),
                      axis=1, keepdims=True)                           # (N, 1)
    edge_max = jnp.sum(seg_f * seg_max, axis=0, keepdims=True)         # (1, E) exact
    expv = jnp.exp(prods_row - edge_max)                               # (1, E)
    seg_sum = jnp.sum(seg_f * expv, axis=1, keepdims=True)             # (N, 1)
    edge_sum = jnp.sum(seg_f * seg_sum, axis=0, keepdims=True)         # (1, E) exact
    att_ref[...] = expv * pl.reciprocal(edge_sum + f32(1e-16), approx=True)


# ---------------------------------------------------------------------------
# Wrapper: parameter packing + pallas_call + output layout plumbing.
# ---------------------------------------------------------------------------
def sp_graph_trans_attention(x, edge, params, *, heads, d_k, attention_norm_idx=1):
    n, f = x.shape
    a = heads * d_k
    e = edge.shape[1]
    f32 = jnp.float32

    # Pack per-head [Wq ; Wk ; Wv] -> (H, 3*d_k, F) and biases -> (H, 3*d_k, 1).
    def per_head_w(w):                       # w: (F, A) -> (H, d_k, F)
        return jnp.transpose(w.reshape(f, heads, d_k), (1, 2, 0))

    def per_head_b(b):                       # b: (1, A) -> (H, d_k, 1)
        return b.reshape(heads, d_k)[:, :, None]

    w_packed = jnp.concatenate(
        [per_head_w(params["wq"]), per_head_w(params["wk"]), per_head_w(params["wv"])],
        axis=1).astype(f32)                  # (H, 3*d_k, F)
    b_packed = jnp.concatenate(
        [per_head_b(params["bq"]), per_head_b(params["bk"]), per_head_b(params["bv"])],
        axis=1).astype(f32)                  # (H, 3*d_k, 1)

    x_t = jnp.transpose(x).astype(f32)                       # (F, N)
    e0_row = edge[0].reshape(1, e).astype(jnp.int32)          # (1, E)
    e1_row = edge[1].reshape(1, e).astype(jnp.int32)          # (1, E)
    g_row = edge[attention_norm_idx].reshape(1, e).astype(jnp.int32)

    att_t, v_t, prods_t = pl.pallas_call(
        functools.partial(_fused_attn_kernel, d_k=d_k, n_nodes=n),
        grid=(heads,),
        out_shape=[
            jax.ShapeDtypeStruct((heads, 1, e), f32),     # attention (transposed)
            jax.ShapeDtypeStruct((heads, d_k, n), f32),   # v (transposed, per head)
            jax.ShapeDtypeStruct((heads, 1, e), f32),     # prods (transposed)
        ],
        in_specs=[
            pl.BlockSpec((f, n), lambda h: (0, 0)),                   # x^T
            pl.BlockSpec((None, 3 * d_k, f), lambda h: (h, 0, 0)),    # packed W (per head)
            pl.BlockSpec((None, 3 * d_k, 1), lambda h: (h, 0, 0)),    # packed b (per head)
            pl.BlockSpec((1, e), lambda h: (0, 0)),                   # edge[0]
            pl.BlockSpec((1, e), lambda h: (0, 0)),                   # edge[1]
            pl.BlockSpec((1, e), lambda h: (0, 0)),                   # softmax segment idx
        ],
        out_specs=[
            pl.BlockSpec((None, 1, e), lambda h: (h, 0, 0)),
            pl.BlockSpec((None, d_k, n), lambda h: (h, 0, 0)),
            pl.BlockSpec((None, 1, e), lambda h: (h, 0, 0)),
        ],
        compiler_params=pltpu.CompilerParams(dimension_semantics=("parallel",)),
    )(x_t, w_packed, b_packed, e0_row, e1_row, g_row)

    # Layout plumbing back to the module's return shapes (XLA-side, cheap).
    attention = jnp.transpose(att_t[:, 0, :])            # (E, H)
    prods = jnp.transpose(prods_t[:, 0, :])              # (E, H)
    v_heads = jnp.transpose(v_t, (2, 1, 0))              # (N, d_k, H)  == v.view(-1,h,d_k).transpose(1,2)
    return attention, (v_heads, prods)


# ---------------------------------------------------------------------------
# Pure-JAX reference (mirrors the PyTorch forward for the chosen opt).
# ---------------------------------------------------------------------------
def ref_forward(x, edge, params, *, heads, d_k, attention_norm_idx=1):
    n = x.shape[0]
    q = x @ params["wq"] + params["bq"]
    k = x @ params["wk"] + params["bk"]
    v = x @ params["wv"] + params["bv"]
    qh = q.reshape(n, heads, d_k).transpose(0, 2, 1)
    kh = k.reshape(n, heads, d_k).transpose(0, 2, 1)
    vh = v.reshape(n, heads, d_k).transpose(0, 2, 1)
    src = qh[edge[0]]
    dst = kh[edge[1]]
    prods = jnp.sum(src * dst, axis=1) / np.sqrt(d_k)           # (E, heads)
    idx = edge[attention_norm_idx]
    seg_max = jax.ops.segment_max(prods, idx, num_segments=n)
    ex = jnp.exp(prods - seg_max[idx])
    seg_sum = jax.ops.segment_sum(ex, idx, num_segments=n)
    att = ex / (seg_sum[idx] + 1e-16)
    return att, (vh, prods)


if __name__ == "__main__":
    key = jax.random.PRNGKey(0)
    N, F, heads, d_k = 16, 32, 4, 8          # in_features=32, attention_dim=32, heads=4
    A = heads * d_k
    E = 24
    ks = jax.random.split(key, 9)

    x = jax.random.normal(ks[0], (N, F), jnp.float32)
    edge = jnp.stack([
        jax.random.randint(ks[1], (E,), 0, N),
        jax.random.randint(ks[2], (E,), 0, N),
    ]).astype(jnp.int32)

    # Deterministic synthetic parameters (nn.Linear shapes, stored as [F, A] / [1, A];
    # the module's init_weights would set weights to 1e-5 — small random values are
    # used for a non-degenerate test, seeded from PRNGKey(0)).
    params = {
        "wq": 0.1 * jax.random.normal(ks[3], (F, A), jnp.float32),
        "bq": 0.1 * jax.random.normal(ks[4], (1, A), jnp.float32),
        "wk": 0.1 * jax.random.normal(ks[5], (F, A), jnp.float32),
        "bk": 0.1 * jax.random.normal(ks[6], (1, A), jnp.float32),
        "wv": 0.1 * jax.random.normal(ks[7], (F, A), jnp.float32),
        "bv": 0.1 * jax.random.normal(ks[8], (1, A), jnp.float32),
    }

    att, (v, prods) = jax.block_until_ready(
        sp_graph_trans_attention(x, edge, params, heads=heads, d_k=d_k,
                                 attention_norm_idx=1))

    ra, (rv, rp) = ref_forward(x, edge, params, heads=heads, d_k=d_k,
                               attention_norm_idx=1)

    assert att.shape == (E, heads)
    assert v.shape == (N, d_k, heads)
    assert prods.shape == (E, heads)
    assert jnp.allclose(prods, rp, atol=1e-4, rtol=1e-2)
    assert jnp.allclose(v, rv, atol=1e-4, rtol=1e-2)
    # attention uses pl.reciprocal(approx=True) -> slightly looser absolute tolerance
    assert jnp.allclose(att, ra, atol=5e-3, rtol=1e-2)

    print("KERNEL_OK")
</pallas_src>

<mosaic_0001>
module attributes {stable_mosaic.version = 11 : i64} {
  func.func @_fused_attn_kernel(%arg0: i32, %arg1: memref<32x16xf32, #tpu.memory_space<vmem>>, %arg2: memref<1x24x32xf32, #tpu.memory_space<vmem>>, %arg3: memref<1x24x1xf32, #tpu.memory_space<vmem>>, %arg4: memref<1x24xi32, #tpu.memory_space<vmem>>, %arg5: memref<1x24xi32, #tpu.memory_space<vmem>>, %arg6: memref<1x24xi32, #tpu.memory_space<vmem>>, %arg7: memref<1x1x24xf32, #tpu.memory_space<vmem>>, %arg8: memref<1x8x16xf32, #tpu.memory_space<vmem>>, %arg9: memref<1x1x24xf32, #tpu.memory_space<vmem>>) attributes {dimension_semantics = [#tpu.dimension_semantics<parallel>], iteration_bounds = array<i64: 4>, scalar_prefetch = 0 : i64, scratch_operands = 0 : i64, tpu.core_type = #tpu.core_type<tc>, window_params = [{pipeline_mode = #tpu.pipeline_mode<synchronous>, transform_indices = @transform_0, window_bounds = array<i64: 32, 16>}, {transform_indices = @transform_1, window_bounds = array<i64: 1, 24, 32>}, {transform_indices = @transform_2, window_bounds = array<i64: 1, 24, 1>}, {pipeline_mode = #tpu.pipeline_mode<synchronous>, transform_indices = @transform_3, window_bounds = array<i64: 1, 24>}, {pipeline_mode = #tpu.pipeline_mode<synchronous>, transform_indices = @transform_4, window_bounds = array<i64: 1, 24>}, {pipeline_mode = #tpu.pipeline_mode<synchronous>, transform_indices = @transform_5, window_bounds = array<i64: 1, 24>}, {transform_indices = @transform_6, window_bounds = array<i64: 1, 1, 24>}, {transform_indices = @transform_7, window_bounds = array<i64: 1, 8, 16>}, {transform_indices = @transform_8, window_bounds = array<i64: 1, 1, 24>}]} {
    %c0 = arith.constant 0 : index
    %c0_0 = arith.constant 0 : index
    %c0_1 = arith.constant 0 : index
    %0 = vector.load %arg2[%c0, %c0_0, %c0_1] : memref<1x24x32xf32, #tpu.memory_space<vmem>>, vector<1x24x32xf32>
    %1 = vector.shape_cast %0 : vector<1x24x32xf32> to vector<24x32xf32>
    %c0_2 = arith.constant 0 : index
    %c0_3 = arith.constant 0 : index
    %2 = vector.load %arg1[%c0_2, %c0_3] : memref<32x16xf32, #tpu.memory_space<vmem>>, vector<32x16xf32>
    %cst = arith.constant dense<0.000000e+00> : vector<24x16xf32>
    %3 = tpu.matmul %1, %2, %cst {dimension_numbers = #tpu.dot_dimension_numbers<[1], [0], [0], [1], [0, 0, 1, 1], [], []>} : vector<24x32xf32>, vector<32x16xf32>, vector<24x16xf32> -> vector<24x16xf32>
    %c0_4 = arith.constant 0 : index
    %c0_5 = arith.constant 0 : index
    %c0_6 = arith.constant 0 : index
    %4 = vector.load %arg3[%c0_4, %c0_5, %c0_6] : memref<1x24x1xf32, #tpu.memory_space<vmem>>, vector<1x24x1xf32>
    %5 = vector.shape_cast %4 : vector<1x24x1xf32> to vector<24x1xf32>
    %6 = vector.broadcast %5 : vector<24x1xf32> to vector<24x16xf32>
    %7 = arith.addf %3, %6 : vector<24x16xf32>
    %8 = vector.extract_strided_slice %7 {offsets = [0, 0], sizes = [8, 16], strides = [1, 1]} : vector<24x16xf32> to vector<8x16xf32>
    %9 = vector.extract_strided_slice %7 {offsets = [8, 0], sizes = [8, 16], strides = [1, 1]} : vector<24x16xf32> to vector<8x16xf32>
    %10 = vector.extract_strided_slice %7 {offsets = [16, 0], sizes = [8, 16], strides = [1, 1]} : vector<24x16xf32> to vector<8x16xf32>
    %c0_7 = arith.constant 0 : index
    %c0_8 = arith.constant 0 : index
    %c0_9 = arith.constant 0 : index
    %11 = vector.load %arg8[%c0_7, %c0_8, %c0_9] : memref<1x8x16xf32, #tpu.memory_space<vmem>>, vector<1x8x16xf32>
    %12 = vector.shape_cast %11 : vector<1x8x16xf32> to vector<8x16xf32>
    %13 = vector.shape_cast %10 : vector<8x16xf32> to vector<1x8x16xf32>
    tpu.vector_store %arg8[%c0_7, %c0_8, %c0_9], %13 {strides = array<i32>} : memref<1x8x16xf32, #tpu.memory_space<vmem>>, vector<1x8x16xf32>,
    %14 = tpu.iota {dimensions = array<i32: 0>} : vector<16x1xi32>
    %c0_10 = arith.constant 0 : index
    %c0_11 = arith.constant 0 : index
    %15 = vector.load %arg4[%c0_10, %c0_11] : memref<1x24xi32, #tpu.memory_space<vmem>>, vector<1x24xi32>
    %16 = vector.broadcast %14 : vector<16x1xi32> to vector<16x24xi32>
    %17 = vector.broadcast %15 : vector<1x24xi32> to vector<16x24xi32>
    %18 = arith.cmpi eq, %16, %17 : vector<16x24xi32>
    %19 = arith.extui %18 : vector<16x24xi1> to vector<16x24xi32>
    %20 = arith.sitofp %19 : vector<16x24xi32> to vector<16x24xf32>
    %c0_12 = arith.constant 0 : index
    %c0_13 = arith.constant 0 : index
    %21 = vector.load %arg5[%c0_12, %c0_13] : memref<1x24xi32, #tpu.memory_space<vmem>>, vector<1x24xi32>
    %22 = vector.broadcast %14 : vector<16x1xi32> to vector<16x24xi32>
    %23 = vector.broadcast %21 : vector<1x24xi32> to vector<16x24xi32>
    %24 = arith.cmpi eq, %22, %23 : vector<16x24xi32>
    %25 = arith.extui %24 : vector<16x24xi1> to vector<16x24xi32>
    %26 = arith.sitofp %25 : vector<16x24xi32> to vector<16x24xf32>
    %cst_14 = arith.constant dense<0.000000e+00> : vector<8x24xf32>
    %27 = tpu.matmul %8, %20, %cst_14 {dimension_numbers = #tpu.dot_dimension_numbers<[1], [0], [0], [1], [0, 0, 1, 1], [], []>} : vector<8x16xf32>, vector<16x24xf32>, vector<8x24xf32> -> vector<8x24xf32>
    %cst_15 = arith.constant dense<0.000000e+00> : vector<8x24xf32>
    %28 = tpu.matmul %9, %26, %cst_15 {dimension_numbers = #tpu.dot_dimension_numbers<[1], [0], [0], [1], [0, 0, 1, 1], [], []>} : vector<8x16xf32>, vector<16x24xf32>, vector<8x24xf32> -> vector<8x24xf32>
    %29 = arith.mulf %27, %28 : vector<8x24xf32>
    %cst_16 = arith.constant dense<0.000000e+00> : vector<24xf32>
    %30 = vector.multi_reduction <add>, %29, %cst_16 [0] : vector<8x24xf32> to vector<24xf32>
    %31 = vector.shape_cast %30 : vector<24xf32> to vector<1x24xf32>
    %cst_17 = arith.constant 0.353553385 : f32
    %32 = vector.broadcast %cst_17 : f32 to vector<1x24xf32>
    %33 = arith.mulf %31, %32 : vector<1x24xf32>
    %c0_18 = arith.constant 0 : index
    %c0_19 = arith.constant 0 : index
    %c0_20 = arith.constant 0 : index
    %34 = vector.load %arg9[%c0_18, %c0_19, %c0_20] : memref<1x1x24xf32, #tpu.memory_space<vmem>>, vector<1x1x24xf32>
    %35 = vector.shape_cast %34 : vector<1x1x24xf32> to vector<1x24xf32>
    %36 = vector.shape_cast %33 : vector<1x24xf32> to vector<1x1x24xf32>
    tpu.vector_store %arg9[%c0_18, %c0_19, %c0_20], %36 {strides = array<i32>} : memref<1x1x24xf32, #tpu.memory_space<vmem>>, vector<1x1x24xf32>,
    %c0_21 = arith.constant 0 : index
    %c0_22 = arith.constant 0 : index
    %37 = vector.load %arg6[%c0_21, %c0_22] : memref<1x24xi32, #tpu.memory_space<vmem>>, vector<1x24xi32>
    %38 = vector.broadcast %14 : vector<16x1xi32> to vector<16x24xi32>
    %39 = vector.broadcast %37 : vector<1x24xi32> to vector<16x24xi32>
    %40 = arith.cmpi eq, %38, %39 : vector<16x24xi32>
    %41 = arith.extui %40 : vector<16x24xi1> to vector<16x24xi32>
    %42 = arith.sitofp %41 : vector<16x24xi32> to vector<16x24xf32>
    %cst_23 = arith.constant -1.000000e+30 : f32
    %43 = vector.shape_cast %33 : vector<1x24xf32> to vector<1x24xf32>
    %44 = vector.broadcast %43 : vector<1x24xf32> to vector<16x24xf32>
    %45 = vector.broadcast %cst_23 : f32 to vector<16x24xf32>
    %46 = arith.select %40, %44, %45 : vector<16x24xi1>, vector<16x24xf32>
    %cst_24 = arith.constant dense<0xFF800000> : vector<16xf32>
    %47 = vector.multi_reduction <maximumf>, %46, %cst_24 [1] : vector<16x24xf32> to vector<16xf32>
    %48 = vector.shape_cast %47 : vector<16xf32> to vector<16x1xf32>
    %49 = vector.broadcast %48 : vector<16x1xf32> to vector<16x24xf32>
    %50 = arith.mulf %42, %49 : vector<16x24xf32>
    %cst_25 = arith.constant dense<0.000000e+00> : vector<24xf32>
    %51 = vector.multi_reduction <add>, %50, %cst_25 [0] : vector<16x24xf32> to vector<24xf32>
    %52 = vector.shape_cast %51 : vector<24xf32> to vector<1x24xf32>
    %53 = arith.subf %33, %52 : vector<1x24xf32>
    %54 = math.exp %53 : vector<1x24xf32>
    %55 = vector.broadcast %54 : vector<1x24xf32> to vector<16x24xf32>
    %56 = arith.mulf %42, %55 : vector<16x24xf32>
    %cst_26 = arith.constant dense<0.000000e+00> : vector<16xf32>
    %57 = vector.multi_reduction <add>, %56, %cst_26 [1] : vector<16x24xf32> to vector<16xf32>
    %58 = vector.shape_cast %57 : vector<16xf32> to vector<16x1xf32>
    %59 = vector.broadcast %58 : vector<16x1xf32> to vector<16x24xf32>
    %60 = arith.mulf %42, %59 : vector<16x24xf32>
    %cst_27 = arith.constant dense<0.000000e+00> : vector<24xf32>
    %61 = vector.multi_reduction <add>, %60, %cst_27 [0] : vector<16x24xf32> to vector<24xf32>
    %62 = vector.shape_cast %61 : vector<24xf32> to vector<1x24xf32>
    %cst_28 = arith.constant 1.000000e-16 : f32
    %63 = vector.broadcast %cst_28 : f32 to vector<1x24xf32>
    %64 = arith.addf %62, %63 : vector<1x24xf32>
    %65 = tpu.reciprocal %64 {approx = true} : vector<1x24xf32> -> vector<1x24xf32>
    %66 = arith.mulf %54, %65 : vector<1x24xf32>
    %c0_29 = arith.constant 0 : index
    %c0_30 = arith.constant 0 : index
    %c0_31 = arith.constant 0 : index
    %67 = vector.load %arg7[%c0_29, %c0_30, %c0_31] : memref<1x1x24xf32, #tpu.memory_space<vmem>>, vector<1x1x24xf32>
    %68 = vector.shape_cast %67 : vector<1x1x24xf32> to vector<1x24xf32>
    %69 = vector.shape_cast %66 : vector<1x24xf32> to vector<1x1x24xf32>
    tpu.vector_store %arg7[%c0_29, %c0_30, %c0_31], %69 {strides = array<i32>} : memref<1x1x24xf32, #tpu.memory_space<vmem>>, vector<1x1x24xf32>,
    return
  }
  func.func @transform_0(%arg0: i32) -> (i32, i32) {
    %c0_i32 = arith.constant 0 : i32
    %c0_i32_0 = arith.constant 0 : i32
    %c0_i32_1 = arith.constant 0 : i32
    return %c0_i32, %c0_i32_0 : i32, i32
  }
  func.func @transform_1(%arg0: i32) -> (i32, i32, i32) {
    %c0_i32 = arith.constant 0 : i32
    %c0_i32_0 = arith.constant 0 : i32
    %c0_i32_1 = arith.constant 0 : i32
    return %arg0, %c0_i32, %c0_i32_0 : i32, i32, i32
  }
  func.func @transform_2(%arg0: i32) -> (i32, i32, i32) {
    %c0_i32 = arith.constant 0 : i32
    %c0_i32_0 = arith.constant 0 : i32
    %c0_i32_1 = arith.constant 0 : i32
    return %arg0, %c0_i32, %c0_i32_0 : i32, i32, i32
  }
  func.func @transform_3(%arg0: i32) -> (i32, i32) {
    %c0_i32 = arith.constant 0 : i32
    %c0_i32_0 = arith.constant 0 : i32
    %c0_i32_1 = arith.constant 0 : i32
    return %c0_i32, %c0_i32_0 : i32, i32
  }
  func.func @transform_4(%arg0: i32) -> (i32, i32) {
    %c0_i32 = arith.constant 0 : i32
    %c0_i32_0 = arith.constant 0 : i32
    %c0_i32_1 = arith.constant 0 : i32
    return %c0_i32, %c0_i32_0 : i32, i32
  }
  func.func @transform_5(%arg0: i32) -> (i32, i32) {
    %c0_i32 = arith.constant 0 : i32
    %c0_i32_0 = arith.constant 0 : i32
    %c0_i32_1 = arith.constant 0 : i32
    return %c0_i32, %c0_i32_0 : i32, i32
  }
  func.func @transform_6(%arg0: i32) -> (i32, i32, i32) {
    %c0_i32 = arith.constant 0 : i32
    %c0_i32_0 = arith.constant 0 : i32
    %c0_i32_1 = arith.constant 0 : i32
    return %arg0, %c0_i32, %c0_i32_0 : i32, i32, i32
  }
  func.func @transform_7(%arg0: i32) -> (i32, i32, i32) {
    %c0_i32 = arith.constant 0 : i32
    %c0_i32_0 = arith.constant 0 : i32
    %c0_i32_1 = arith.constant 0 : i32
    return %arg0, %c0_i32, %c0_i32_0 : i32, i32, i32
  }
  func.func @transform_8(%arg0: i32) -> (i32, i32, i32) {
    %c0_i32 = arith.constant 0 : i32
    %c0_i32_0 = arith.constant 0 : i32
    %c0_i32_1 = arith.constant 0 : i32
    return %arg0, %c0_i32, %c0_i32_0 : i32, i32, i32
  }
}

</mosaic_0001>

<llo_original>
// kernel: tpu_custom_call.1
$region0: #{tpu_custom_call.1}
  #allocation0 [shape = 'u32[]', space=smem, size = 0x4, offset = 0x4, fixed_abs, tag = 'smem constant byte address 0x4 - core index']
  #allocation1 [shape = 'u32[72,128]{1,0:T(1,128)}', space=vmem, size = 0x9000, scoped, tag = 'internal scratch']
  %s0 = inlined_call_operand.vmem [shape: f32[32,16], index: 0, kind: input, shape index: {}]
  %s1 = inlined_call_operand.vmem [shape: f32[4,24,32], index: 1, kind: input, shape index: {}]
  %s2 = inlined_call_operand.vmem [shape: f32[4,24,1], index: 2, kind: input, shape index: {}]
  %s3 = inlined_call_operand.vmem [shape: s32[1,24], index: 3, kind: input, shape index: {}]
  %s4 = inlined_call_operand.vmem [shape: s32[1,24], index: 4, kind: input, shape index: {}]
  %s5 = inlined_call_operand.vmem [shape: s32[1,24], index: 5, kind: input, shape index: {}]
  %s6 = inlined_call_operand.hbm [shape: f32[4,1,24], index: 6, kind: output, shape index: {0}]
  %s7 = inlined_call_operand.hbm [shape: f32[4,8,16], index: 7, kind: output, shape index: {1}]
  %s8 = inlined_call_operand.hbm [shape: f32[4,1,24], index: 8, kind: output, shape index: {2}]
  %9 = xla_tuple %s6, %s7, %s8
  %s10 = sld [smem:[#allocation0]]
  $region73: #{tpu_custom_call.1} parent=0
    _
  %s12 = ssub.s32 1, %s10
  %s13 = scalar_select 0, %s12, %s10
  $region1: #{tpu_custom_call.1} parent=0
    #allocation2 [shape = 'u8[1024]{0}', space=vmem, size = 0x400, scoped, tag = 'output window, operand 0']
    #allocation3 [shape = 's32[2]{0}', space=sflag, size = 0x8, scoped, tag = 'scoped memory for tpu_custom_call.1']
    #allocation4 [shape = 'u8[8192]{0}', space=vmem, size = 0x2000, scoped, tag = 'output window, operand 1']
    #allocation5 [shape = 's32[2]{0}', space=sflag, size = 0x8, scoped, tag = 'scoped memory for tpu_custom_call.1']
    #allocation6 [shape = 'u8[1024]{0}', space=vmem, size = 0x400, scoped, tag = 'output window, operand 2']
    %14 = vsyncpa [#allocation3], 0
    %s15 = scalar_lea.sflag [#allocation3], 1
    %16 = vsyncpa %s15, 0
    %17 = vsyncpa [#allocation5], 0
    %s18 = scalar_lea.sflag [#allocation5], 1
    %19 = vsyncpa %s18, 0
    loop: start=0, step=1, limit=6
    $region2: #{tpu_custom_call.1} parent=1 // loop_pre_header
      _
    $region3: #{tpu_custom_call.1} parent=1 // loop_header
      %s21 = sphi 0, %s25
      %p22 = scmp.ge.s32.totalorder %s21, 6
      %s29 = sphi 0, %s29
      %s31 = sphi 0, %s29
      %s32 = sphi 0, %s31
      %s46 = sphi 0, %s32
      %s52 = sphi 0, %s54
      %s55 = sphi 0, %s52
      %s56 = sphi 0, %s55
      %s72 = sphi 0, %s56
      %s78 = sphi 0, %s80
      %s81 = sphi 0, %s78
      %s82 = sphi 0, %s81
      %s98 = sphi 0, %s82
      %s102 = sphi 0, %s102
      %s104 = sphi 0, %s102
      %s105 = sphi 0, %s104
      %s119 = sphi 0, %s105
      %s123 = sphi 0, %s123
      %s125 = sphi 0, %s123
      %s126 = sphi 0, %s125
      %s140 = sphi 0, %s126
      %s144 = sphi 0, %s144
      %s146 = sphi 0, %s144
      %s147 = sphi 0, %s146
      %s161 = sphi 0, %s147
      %s167 = sphi 0, %s169
      %s170 = sphi 0, %s167
      %s171 = sphi 0, %s170
      %s187 = sphi 0, %s171
      %s193 = sphi 0, %s195
      %s196 = sphi 0, %s193
      %s197 = sphi 0, %s196
      %s213 = sphi 0, %s197
      %s219 = sphi 0, %s221
      %s222 = sphi 0, %s219
      %s223 = sphi 0, %s222
      %s239 = sphi 0, %s223
    $region4: #{tpu_custom_call.1} parent=1 // loop_header_branch
      %24 = sbr.rel (%p22) target = $region8
    $region5: #{tpu_custom_call.1} parent=1 // loop_body
      %s26 = ssub.s32 %s21, 1
      %s27 = ssub.s32 %s21, 2
      %s28 = sadd.s32 %s21, 1
      %s30 = sadd.s32 %s29, 1
      %p33 = scmp.eq.s32.totalorder %s21, 3
      %p34 = scmp.ne.s32.totalorder %s29, %s31
      %p35 = scmp.eq.s32.totalorder %s21, 0
      %p36 = por %p34, %p35
      %p37 = scmp.ne.s32.totalorder %s29, %s31
      %p38 = scmp.eq.s32.totalorder %s26, 3
      %p39 = por %p37, %p38
      %p40 = scmp.ne.s32.totalorder %s31, %s32
      %p41 = scmp.eq.s32.totalorder %s26, 0
      %p42 = por %p40, %p41
      %p43 = scmp.ne.s32.totalorder %s31, %s32
      %p44 = scmp.eq.s32.totalorder %s27, 3
      %p45 = por %p43, %p44
      %p47 = scmp.ne.s32.totalorder %s32, %s46
      %p48 = scmp.eq.s32.totalorder %s27, 0
      %p49 = por %p47, %p48
      %s50 = ssub.s32 %s21, %s28
      %p51 = scmp.eq.s32.totalorder %s50, 0
      %s53 = sadd.s32 %s52, 1
      %s54 = scalar_select %p51, %s52, %s53
      %p57 = pneg %p51
      %p58 = scmp.eq.s32.totalorder %s21, 3
      %p59 = por %p57, %p58
      %p60 = scmp.ne.s32.totalorder %s52, %s55
      %p61 = scmp.eq.s32.totalorder %s21, 0
      %p62 = por %p60, %p61
      %p63 = scmp.ne.s32.totalorder %s52, %s55
      %p64 = scmp.eq.s32.totalorder %s26, 3
      %p65 = por %p63, %p64
      %p66 = scmp.ne.s32.totalorder %s55, %s56
      %p67 = scmp.eq.s32.totalorder %s26, 0
      %p68 = por %p66, %p67
      %p69 = scmp.ne.s32.totalorder %s55, %s56
      %p70 = scmp.eq.s32.totalorder %s27, 3
      %p71 = por %p69, %p70
      %p73 = scmp.ne.s32.totalorder %s56, %s72
      %p74 = scmp.eq.s32.totalorder %s27, 0
      %p75 = por %p73, %p74
      %s76 = ssub.s32 %s21, %s28
      %p77 = scmp.eq.s32.totalorder %s76, 0
      %s79 = sadd.s32 %s78, 1
      %s80 = scalar_select %p77, %s78, %s79
      %p83 = pneg %p77
      %p84 = scmp.eq.s32.totalorder %s21, 3
      %p85 = por %p83, %p84
      %p86 = scmp.ne.s32.totalorder %s78, %s81
      %p87 = scmp.eq.s32.totalorder %s21, 0
      %p88 = por %p86, %p87
      %p89 = scmp.ne.s32.totalorder %s78, %s81
      %p90 = scmp.eq.s32.totalorder %s26, 3
      %p91 = por %p89, %p90
      %p92 = scmp.ne.s32.totalorder %s81, %s82
      %p93 = scmp.eq.s32.totalorder %s26, 0
      %p94 = por %p92, %p93
      %p95 = scmp.ne.s32.totalorder %s81, %s82
      %p96 = scmp.eq.s32.totalorder %s27, 3
      %p97 = por %p95, %p96
      %p99 = scmp.ne.s32.totalorder %s82, %s98
      %p100 = scmp.eq.s32.totalorder %s27, 0
      %p101 = por %p99, %p100
      %s103 = sadd.s32 %s102, 1
      %p106 = scmp.eq.s32.totalorder %s21, 3
      %p107 = scmp.ne.s32.totalorder %s102, %s104
      %p108 = scmp.eq.s32.totalorder %s21, 0
      %p109 = por %p107, %p108
      %p110 = scmp.ne.s32.totalorder %s102, %s104
      %p111 = scmp.eq.s32.totalorder %s26, 3
      %p112 = por %p110, %p111
      %p113 = scmp.ne.s32.totalorder %s104, %s105
      %p114 = scmp.eq.s32.totalorder %s26, 0
      %p115 = por %p113, %p114
      %p116 = scmp.ne.s32.totalorder %s104, %s105
      %p117 = scmp.eq.s32.totalorder %s27, 3
      %p118 = por %p116, %p117
      %p120 = scmp.ne.s32.totalorder %s105, %s119
      %p121 = scmp.eq.s32.totalorder %s27, 0
      %p122 = por %p120, %p121
      %s124 = sadd.s32 %s123, 1
      %p127 = scmp.eq.s32.totalorder %s21, 3
      %p128 = scmp.ne.s32.totalorder %s123, %s125
      %p129 = scmp.eq.s32.totalorder %s21, 0
      %p130 = por %p128, %p129
      %p131 = scmp.ne.s32.totalorder %s123, %s125
      %p132 = scmp.eq.s32.totalorder %s26, 3
      %p133 = por %p131, %p132
      %p134 = scmp.ne.s32.totalorder %s125, %s126
      %p135 = scmp.eq.s32.totalorder %s26, 0
      %p136 = por %p134, %p135
      %p137 = scmp.ne.s32.totalorder %s125, %s126
      %p138 = scmp.eq.s32.totalorder %s27, 3
      %p139 = por %p137, %p138
      %p141 = scmp.ne.s32.totalorder %s126, %s140
      %p142 = scmp.eq.s32.totalorder %s27, 0
      %p143 = por %p141, %p142
      %s145 = sadd.s32 %s144, 1
      %p148 = scmp.eq.s32.totalorder %s21, 3
      %p149 = scmp.ne.s32.totalorder %s144, %s146
      %p150 = scmp.eq.s32.totalorder %s21, 0
      %p151 = por %p149, %p150
      %p152 = scmp.ne.s32.totalorder %s144, %s146
      %p153 = scmp.eq.s32.totalorder %s26, 3
      %p154 = por %p152, %p153
      %p155 = scmp.ne.s32.totalorder %s146, %s147
      %p156 = scmp.eq.s32.totalorder %s26, 0
      %p157 = por %p155, %p156
      %p158 = scmp.ne.s32.totalorder %s146, %s147
      %p159 = scmp.eq.s32.totalorder %s27, 3
      %p160 = por %p158, %p159
      %p162 = scmp.ne.s32.totalorder %s147, %s161
      %p163 = scmp.eq.s32.totalorder %s27, 0
      %p164 = por %p162, %p163
      %s165 = ssub.s32 %s21, %s28
      %p166 = scmp.eq.s32.totalorder %s165, 0
      %s168 = sadd.s32 %s167, 1
      %s169 = scalar_select %p166, %s167, %s168
      %p172 = pneg %p166
      %p173 = scmp.eq.s32.totalorder %s21, 3
      %p174 = por %p172, %p173
      %p175 = scmp.ne.s32.totalorder %s167, %s170
      %p176 = scmp.eq.s32.totalorder %s21, 0
      %p177 = por %p175, %p176
      %p178 = scmp.ne.s32.totalorder %s167, %s170
      %p179 = scmp.eq.s32.totalorder %s26, 3
      %p180 = por %p178, %p179
      %p181 = scmp.ne.s32.totalorder %s170, %s171
      %p182 = scmp.eq.s32.totalorder %s26, 0
      %p183 = por %p181, %p182
      %p184 = scmp.ne.s32.totalorder %s170, %s171
      %p185 = scmp.eq.s32.totalorder %s27, 3
      %p186 = por %p184, %p185
      %p188 = scmp.ne.s32.totalorder %s171, %s187
      %p189 = scmp.eq.s32.totalorder %s27, 0
      %p190 = por %p188, %p189
      %s191 = ssub.s32 %s21, %s28
      %p192 = scmp.eq.s32.totalorder %s191, 0
      %s194 = sadd.s32 %s193, 1
      %s195 = scalar_select %p192, %s193, %s194
      %p198 = pneg %p192
      %p199 = scmp.eq.s32.totalorder %s21, 3
      %p200 = por %p198, %p199
      %p201 = scmp.ne.s32.totalorder %s193, %s196
      %p202 = scmp.eq.s32.totalorder %s21, 0
      %p203 = por %p201, %p202
      %p204 = scmp.ne.s32.totalorder %s193, %s196
      %p205 = scmp.eq.s32.totalorder %s26, 3
      %p206 = por %p204, %p205
      %p207 = scmp.ne.s32.totalorder %s196, %s197
      %p208 = scmp.eq.s32.totalorder %s26, 0
      %p209 = por %p207, %p208
      %p210 = scmp.ne.s32.totalorder %s196, %s197
      %p211 = scmp.eq.s32.totalorder %s27, 3
      %p212 = por %p210, %p211
      %p214 = scmp.ne.s32.totalorder %s197, %s213
      %p215 = scmp.eq.s32.totalorder %s27, 0
      %p216 = por %p214, %p215
      %s217 = ssub.s32 %s21, %s28
      %p218 = scmp.eq.s32.totalorder %s217, 0
      %s220 = sadd.s32 %s219, 1
      %s221 = scalar_select %p218, %s219, %s220
      %p224 = pneg %p218
      %p225 = scmp.eq.s32.totalorder %s21, 3
      %p226 = por %p224, %p225
      %p227 = scmp.ne.s32.totalorder %s219, %s222
      %p228 = scmp.eq.s32.totalorder %s21, 0
      %p229 = por %p227, %p228
      %p230 = scmp.ne.s32.totalorder %s219, %s222
      %p231 = scmp.eq.s32.totalorder %s26, 3
      %p232 = por %p230, %p231
      %p233 = scmp.ne.s32.totalorder %s222, %s223
      %p234 = scmp.eq.s32.totalorder %s26, 0
      %p235 = por %p233, %p234
      %p236 = scmp.ne.s32.totalorder %s222, %s223
      %p237 = scmp.eq.s32.totalorder %s27, 3
      %p238 = por %p236, %p237
      %p240 = scmp.ne.s32.totalorder %s223, %s239
      %p241 = scmp.eq.s32.totalorder %s27, 0
      %p242 = por %p240, %p241
      %p243 = scmp.le.s32.totalorder 1, %s21
      %p244 = scmp.lt.s32.totalorder %s21, 5
      %p245 = pnand %p243, %p244
      %p246 = pneg %p245
      // Predicated region
      $region9: #{tpu_custom_call.1} parent=5 // pred_check
        _
      $region10: #{tpu_custom_call.1} parent=5 // pred_check_branch
        %248 = sbr.rel (%p245) target = $region12
      $region11: #{tpu_custom_call.1} parent=5 // pred_region
        %s249 = ssub.s32 %s21, 1
        // Predicated region
        $region13: #{tpu_custom_call.1} parent=11 // pred_check
          %p250 = pneg %p42
        $region14: #{tpu_custom_call.1} parent=11 // pred_check_branch
          %252 = sbr.rel (%p250) target = $region16
        $region15: #{tpu_custom_call.1} parent=11 // pred_region
          _
        $region16: #{tpu_custom_call.1} parent=11 // pred_fallthru
          _
        // Predicated region
        $region17: #{tpu_custom_call.1} parent=11 // pred_check
          %p253 = pneg %p115
        $region18: #{tpu_custom_call.1} parent=11 // pred_check_branch
          %255 = sbr.rel (%p253) target = $region20
        $region19: #{tpu_custom_call.1} parent=11 // pred_region
          _
        $region20: #{tpu_custom_call.1} parent=11 // pred_fallthru
          _
        // Predicated region
        $region21: #{tpu_custom_call.1} parent=11 // pred_check
          %p256 = pneg %p136
        $region22: #{tpu_custom_call.1} parent=11 // pred_check_branch
          %258 = sbr.rel (%p256) target = $region24
        $region23: #{tpu_custom_call.1} parent=11 // pred_region
          _
        $region24: #{tpu_custom_call.1} parent=11 // pred_fallthru
          _
        // Predicated region
        $region25: #{tpu_custom_call.1} parent=11 // pred_check
          %p259 = pneg %p157
        $region26: #{tpu_custom_call.1} parent=11 // pred_check_branch
          %261 = sbr.rel (%p259) target = $region28
        $region27: #{tpu_custom_call.1} parent=11 // pred_region
          _
        $region28: #{tpu_custom_call.1} parent=11 // pred_fallthru
          _
      $region12: #{tpu_custom_call.1} parent=5 // pred_fallthru
        _
      %p262 = scmp.lt.s32.totalorder %s21, 4
      // Predicated region
      $region29: #{tpu_custom_call.1} parent=5 // pred_check
        %p263 = pneg %p262
      $region30: #{tpu_custom_call.1} parent=5 // pred_check_branch
        %265 = sbr.rel (%p263) target = $region32
      $region31: #{tpu_custom_call.1} parent=5 // pred_region
        // Predicated region
        $region33: #{tpu_custom_call.1} parent=31 // pred_check
          %p266 = pneg %p62
        $region34: #{tpu_custom_call.1} parent=31 // pred_check_branch
          %268 = sbr.rel (%p266) target = $region36
        $region35: #{tpu_custom_call.1} parent=31 // pred_region
          %p269 = scmp.lt.s32.totalorder %s21, 3
          %s270 = scalar_select %p269, %s21, 3
          %s271 = smul.addr %s270, 3
          %s272 = smul.addr %s271, 8
          %s273 = scalar_lea.vmem %s1, %s272
        $region36: #{tpu_custom_call.1} parent=31 // pred_fallthru
          _
        // Predicated region
        $region37: #{tpu_custom_call.1} parent=31 // pred_check
          %p274 = pneg %p88
        $region38: #{tpu_custom_call.1} parent=31 // pred_check_branch
          %276 = sbr.rel (%p274) target = $region40
        $region39: #{tpu_custom_call.1} parent=31 // pred_region
          %p277 = scmp.lt.s32.totalorder %s21, 3
          %s278 = scalar_select %p277, %s21, 3
          %s279 = smul.addr %s278, 3
          %s280 = smul.addr %s279, 8
          %s281 = scalar_lea.vmem %s2, %s280
        $region40: #{tpu_custom_call.1} parent=31 // pred_fallthru
          _
      $region32: #{tpu_custom_call.1} parent=5 // pred_fallthru
        _
      %p282 = scmp.le.s32.totalorder 1, %s21
      %p283 = scmp.lt.s32.totalorder %s21, 5
      %p284 = pnand %p282, %p283
      %p285 = pneg %p284
      // Predicated region
      $region41: #{tpu_custom_call.1} parent=5 // pred_check
        _
      $region42: #{tpu_custom_call.1} parent=5 // pred_check_branch
        %287 = sbr.rel (%p284) target = $region44
      $region43: #{tpu_custom_call.1} parent=5 // pred_region
        %s288 = ssub.s32 %s21, 1
        %p289 = pneg %p42
        %p290 = pneg %p39
        %p291 = scmp.lt.s32.totalorder %s26, 3
        %s292 = scalar_select %p291, %s26, 3
        %s293 = smul.addr %s292, 3
        %s294 = smul.addr %s293, 8
        %s295 = scalar_lea.vmem %s1, %s294
        %p296 = pneg %p68
        %p297 = pneg %p65
        %p298 = scmp.lt.s32.totalorder %s26, 3
        %s299 = scalar_select %p298, %s26, 3
        %s300 = smul.addr %s299, 3
        %s301 = smul.addr %s300, 8
        %s302 = scalar_lea.vmem %s2, %s301
        %p303 = pneg %p94
        %p304 = pneg %p91
        %p305 = pneg %p115
        %p306 = pneg %p112
        %p307 = pneg %p136
        %p308 = pneg %p133
        %p309 = pneg %p157
        %p310 = pneg %p154
        %p311 = pneg %p183
        %p312 = pneg %p180
        %s313 = sand.u32 %s170, 1
        %s314 = scalar_lea.sflag [#allocation3], %s313
        %s315 = sand.u32 %s170, 1
        %s316 = scalar_lea.vmem [#allocation2], %s315
        %p317 = pneg %p209
        %p318 = pneg %p206
        %s319 = sand.u32 %s26, 1
        %s320 = scalar_lea.sflag [#allocation5], %s319
        %s321 = sand.u32 %s196, 1
        %s322 = smul.addr %s321, 8
        %s323 = scalar_lea.vmem [#allocation4], %s322
        %p324 = pneg %p235
        %p325 = pneg %p232
        %s326 = sand.u32 %s26, 1
        %s327 = scalar_lea.sflag [#allocation5], %s326
        %s328 = sand.u32 %s222, 1
        %s329 = scalar_lea.vmem [#allocation6], %s328
        %p330 = scmp.lt.s32.totalorder %s26, 3
        %s331 = scalar_select %p330, %s26, 3
        %s332 = smul.addr %s331, 3
        %s333 = smul.addr %s332, 8
        %s334 = scalar_lea.vmem %s1, %s333
        %p335 = scmp.lt.s32.totalorder %s26, 3
        %s336 = scalar_select %p335, %s26, 3
        %s337 = smul.addr %s336, 3
        %s338 = smul.addr %s337, 8
        %s339 = scalar_lea.vmem %s2, %s338
        %v340 = vld [vmem:[%s334] sm:$0xff]
        %v341 = vld [vmem:[%s334 + $0x8] sm:$0xff]
        %v342 = vld [vmem:[%s334 + $0x10] sm:$0xff]
        %v343 = vld [vmem:[%s0] sm:$0xff]
        %v344 = vld [vmem:[%s0 + $0x8] sm:$0xff]
        %v345 = vld [vmem:[%s0 + $0x10] sm:$0xff]
        %v346 = vld [vmem:[%s0 + $0x18] sm:$0xff]
        %v347 = vld [vmem:[%s339] sm:$0xff]
        %v348 = vld [vmem:[%s339 + $0x8] sm:$0xff]
        %v349 = vld [vmem:[%s339 + $0x10] sm:$0xff]
        %351 = vset.pattern.permute.xlu0 0
        %352 = vperm.xlu0 %351, %v347
        %v353 = vpop.permute.xlu0 %352
        %356 = vset.pattern.permute.xlu0 0
        %357 = vperm.xlu0 %356, %v348
        %v358 = vpop.permute.xlu0 %357
        %361 = vset.pattern.permute.xlu0 0
        %362 = vperm.xlu0 %361, %v349
        %v363 = vpop.permute.xlu0 %362
        %vm365 = vcmask 261120
        %v367 = vsel %vm365, %v340, 0
        %v370 = vsel %vm365, %v341, 0
        %v373 = vsel %vm365, %v342, 0
        %375 = vmatpush.msra.mxu0 0.0
        %376 = vmatpush.msra.mxu0 0.0
        %377 = vmatpush.msra.mxu0 0.0
        %378 = vmatpush.msra.mxu0 0.0
        %379 = vmatpush.msra.mxu0 0.0
        %380 = vmatpush.msra.mxu0 0.0
        %381 = vmatpush.msra.mxu0 0.0
        %382 = vmatpush.msra.mxu0 0.0
        %383 = vmatpush.msra.mxu0 0.0
        %384 = vmatpush.msra.mxu0 0.0
        %385 = vmatpush.msra.mxu0 0.0
        %386 = vmatpush.msra.mxu0 0.0
        %387 = vmatpush.msra.mxu0 %v346
        %388 = vmatpush.msra.mxu0 %v345
        %389 = vmatpush.msra.mxu0 %v344
        %390 = vmatpush.msra.mxu0 %v343
        %391 = vmatmul.f32.gmra.mxu0 %v367
        %v392 = vpop.f32.mrf.mxu0
        %v393 = vadd.f32 %v353, %v392
        %394 = vmatmul.f32.gmra.mxu0 %v370
        %v395 = vpop.f32.mrf.mxu0
        %v396 = vadd.f32 %v358, %v395
        %397 = vmatmul.f32.gmra.mxu0 %v373
        %v398 = vpop.f32.mrf.mxu0
        %v399 = vadd.f32 %v363, %v398
        %400 = vdwg.mxu0
        %vm401 = vcmask 130048
        %402 = vst.msk [vmem:[%s323] sm:$0xff] %vm401, %v399
        %v403 = vlaneseq
        %v404 = vshrl.u32 %v403, 7
        %v405 = vadd.s32 %v404, 8
        %v406 = vld [vmem:[%s3] sm:$0x1]
        %v407 = vperm.slane %v406, 0
        %vm408 = vcmp.eq.s32.totalorder %v404, %v407
        %vm409 = vcmp.eq.s32.totalorder %v405, %v407
        %v410 = vsel %vm408, 1, 0
        %v411 = vsel %vm409, 1, 0
        %v412 = vcvt.s32.f32 %v410
        %v413 = vcvt.s32.f32 %v411
        %v414 = vld [vmem:[%s4] sm:$0x1]
        %v415 = vperm.slane %v414, 0
        %vm416 = vcmp.eq.s32.totalorder %v404, %v415
        %vm417 = vcmp.eq.s32.totalorder %v405, %v415
        %v418 = vsel %vm416, 1, 0
        %v419 = vsel %vm417, 1, 0
        %v420 = vcvt.s32.f32 %v418
        %v421 = vcvt.s32.f32 %v419
        %v423 = vsel %vm401, %v393, 0
        %425 = vmatpush.msra.mxu0 0.0
        %426 = vmatpush.msra.mxu0 0.0
        %427 = vmatpush.msra.mxu0 0.0
        %428 = vmatpush.msra.mxu0 0.0
        %429 = vmatpush.msra.mxu0 0.0
        %430 = vmatpush.msra.mxu0 0.0
        %431 = vmatpush.msra.mxu0 0.0
        %432 = vmatpush.msra.mxu0 0.0
        %433 = vmatpush.msra.mxu0 0.0
        %434 = vmatpush.msra.mxu0 0.0
        %435 = vmatpush.msra.mxu0 0.0
        %436 = vmatpush.msra.mxu0 0.0
        %437 = vmatpush.msra.mxu0 0.0
        %438 = vmatpush.msra.mxu0 0.0
        %439 = vmatpush.msra.mxu0 %v413
        %440 = vmatpush.msra.mxu0 %v412
        %441 = vmatmul.f32.gmra.mxu0 %v423
        %v442 = vpop.f32.mrf.mxu0
        %v443 = vadd.f32 0.0, %v442
        %444 = vdwg.mxu0
        %v446 = vsel %vm401, %v396, 0
        %448 = vmatpush.msra.mxu0 0.0
        %449 = vmatpush.msra.mxu0 0.0
        %450 = vmatpush.msra.mxu0 0.0
        %451 = vmatpush.msra.mxu0 0.0
        %452 = vmatpush.msra.mxu0 0.0
        %453 = vmatpush.msra.mxu0 0.0
        %454 = vmatpush.msra.mxu0 0.0
        %455 = vmatpush.msra.mxu0 0.0
        %456 = vmatpush.msra.mxu0 0.0
        %457 = vmatpush.msra.mxu0 0.0
        %458 = vmatpush.msra.mxu0 0.0
        %459 = vmatpush.msra.mxu0 0.0
        %460 = vmatpush.msra.mxu0 0.0
        %461 = vmatpush.msra.mxu0 0.0
        %462 = vmatpush.msra.mxu0 %v421
        %463 = vmatpush.msra.mxu0 %v420
        %464 = vmatmul.f32.gmra.mxu0 %v446
        %v465 = vpop.f32.mrf.mxu0
        %v466 = vadd.f32 0.0, %v465
        %467 = vdwg.mxu0
        %v468 = vmul.f32 %v443, %v466
        %vm469 = vcmask 195584
        %v470 = vsel %vm469, %v468, 0.0
        %v471 = vrot.slane %v470, 4
        %v472 = vadd.f32 %v470, %v471
        %v473 = vrot.slane %v472, 2
        %v474 = vadd.f32 %v472, %v473
        %v475 = vrot.slane %v474, 1
        %v476 = vadd.f32 %v474, %v475
        %v477 = vmul.f32 %v476, 0.35355338
        %vm478 = vcmask 188416
        %479 = vst.msk [vmem:[%s329] sm:$0x1] %vm478, %v477
        %v480 = vld [vmem:[%s5] sm:$0x1]
        %v481 = vperm.slane %v480, 0
        %vm482 = vcmp.eq.s32.totalorder %v404, %v481
        %vm483 = vcmp.eq.s32.totalorder %v405, %v481
        %v484 = vsel %vm482, 1, 0
        %v485 = vsel %vm483, 1, 0
        %v486 = vcvt.s32.f32 %v484
        %v487 = vcvt.s32.f32 %v485
        %v488 = vsel %vm482, %v477, -1e+30
        %v489 = vsel %vm483, %v477, -1e+30
        %v490 = vsel %vm469, %v488, -inf
        %491 = vmax.xlane.f32.xlu0 %v490
        %v492 = vpop.xlane.xlu0 %491
        %v493 = vsel %vm469, %v489, -inf
        %494 = vmax.xlane.f32.xlu0 %v493
        %v495 = vpop.xlane.xlu0 %494
        %v496 = vmul.f32 %v486, %v492
        %v497 = vmul.f32 %v487, %v495
        %v498 = vsel %vm469, %v496, 0.0
        %v499 = vsel %vm469, %v497, 0.0
        %v500 = vadd.f32 %v498, %v499
        %v501 = vrot.slane %v500, 4
        %v502 = vadd.f32 %v500, %v501
        %v503 = vrot.slane %v502, 2
        %v504 = vadd.f32 %v502, %v503
        %v505 = vrot.slane %v504, 1
        %v506 = vadd.f32 %v504, %v505
        %v507 = vsub.f32 %v477, %v506
        %v508 = vmul.f32 %v507, 1.442695
        %v509 = vpow.pop %v508
        %v510 = vmul.f32 %v486, %v509
        %v511 = vmul.f32 %v487, %v509
        %v512 = vsel %vm469, %v510, 0.0
        %513 = vadd.xlane.f32.xlu0 %v512
        %v514 = vpop.xlane.xlu0 %513
        %v515 = vsel %vm469, %v511, 0.0
        %516 = vadd.xlane.f32.xlu0 %v515
        %v517 = vpop.xlane.xlu0 %516
        %v518 = vmul.f32 %v486, %v514
        %v519 = vmul.f32 %v487, %v517
        %v520 = vsel %vm469, %v518, 0.0
        %v521 = vsel %vm469, %v519, 0.0
        %v522 = vadd.f32 %v520, %v521
        %v523 = vrot.slane %v522, 4
        %v524 = vadd.f32 %v522, %v523
        %v525 = vrot.slane %v524, 2
        %v526 = vadd.f32 %v524, %v525
        %v527 = vrot.slane %v526, 1
        %v528 = vadd.f32 %v526, %v527
        %v529 = vadd.f32 %v528, 1e-16
        %v530 = vrcp.pop %v529
        %v531 = vmul.f32 %v509, %v530
        %532 = vst.msk [vmem:[%s316] sm:$0x1] %vm478, %v531
        %s533 = sand.u32 %s170, 1
        %s534 = scalar_lea.sflag [#allocation3], %s533
        %s535 = sand.u32 %s170, 1
        %s536 = scalar_lea.vmem [#allocation2], %s535
        %s537 = sand.u32 %s26, 1
        %s538 = scalar_lea.sflag [#allocation5], %s537
        %s539 = sand.u32 %s196, 1
        %s540 = smul.addr %s539, 8
        %s541 = scalar_lea.vmem [#allocation4], %s540
        %s542 = sand.u32 %s26, 1
        %s543 = scalar_lea.sflag [#allocation5], %s542
        %s544 = sand.u32 %s222, 1
        %s545 = scalar_lea.vmem [#allocation6], %s544
        // Predicated region
        $region45: #{tpu_custom_call.1} parent=43 // pred_check
          %p546 = pneg %p180
        $region46: #{tpu_custom_call.1} parent=43 // pred_check_branch
          %548 = sbr.rel (%p546) target = $region48
        $region47: #{tpu_custom_call.1} parent=43 // pred_region
          %550 = vsyncadd %s534, 0
          %s551 = scalar_lea.hbm %s6, %s26
          %s553 = sshll.u32 %s536, 4
          %s554 = int_to_ptr.vmem [resolvable:$true] %s553
          %s555 = sshll.u32 %s551, 4
          %s556 = int_to_ptr.hbm [resolvable:$true] %s555
          %558 = dma.vmem_to_hbm [thread:$0]  %s554, 16, %s556, %s534
        $region48: #{tpu_custom_call.1} parent=43 // pred_fallthru
          _
        // Predicated region
        $region49: #{tpu_custom_call.1} parent=43 // pred_check
          %p559 = pneg %p206
        $region50: #{tpu_custom_call.1} parent=43 // pred_check_branch
          %561 = sbr.rel (%p559) target = $region52
        $region51: #{tpu_custom_call.1} parent=43 // pred_region
          %563 = vsyncadd %s538, 0
          %s564 = smul.addr %s26, 8
          %s565 = scalar_lea.hbm %s7, %s564
          %s567 = sshll.u32 %s541, 4
          %s568 = int_to_ptr.vmem [resolvable:$true] %s567
          %s569 = sshll.u32 %s565, 4
          %s570 = int_to_ptr.hbm [resolvable:$true] %s569
          %572 = dma.vmem_to_hbm [thread:$0]  %s568, 128, %s570, %s538
        $region52: #{tpu_custom_call.1} parent=43 // pred_fallthru
          _
        // Predicated region
        $region53: #{tpu_custom_call.1} parent=43 // pred_check
          %p573 = pneg %p232
        $region54: #{tpu_custom_call.1} parent=43 // pred_check_branch
          %575 = sbr.rel (%p573) target = $region56
        $region55: #{tpu_custom_call.1} parent=43 // pred_region
          %577 = vsyncadd %s543, 0
          %s578 = scalar_lea.hbm %s8, %s26
          %s580 = sshll.u32 %s545, 4
          %s581 = int_to_ptr.vmem [resolvable:$true] %s580
          %s582 = sshll.u32 %s578, 4
          %s583 = int_to_ptr.hbm [resolvable:$true] %s582
          %585 = dma.vmem_to_hbm [thread:$0]  %s581, 16, %s583, %s543
        $region56: #{tpu_custom_call.1} parent=43 // pred_fallthru
          _
      $region44: #{tpu_custom_call.1} parent=5 // pred_fallthru
        _
      %p586 = scmp.le.s32.totalorder 2, %s21
      // Predicated region
      $region57: #{tpu_custom_call.1} parent=5 // pred_check
        %p587 = pneg %p586
      $region58: #{tpu_custom_call.1} parent=5 // pred_check_branch
        %589 = sbr.rel (%p587) target = $region60
      $region59: #{tpu_custom_call.1} parent=5 // pred_region
        %s590 = ssub.s32 %s21, 2
        // Predicated region
        $region61: #{tpu_custom_call.1} parent=59 // pred_check
          %p591 = pneg %p186
        $region62: #{tpu_custom_call.1} parent=59 // pred_check_branch
          %593 = sbr.rel (%p591) target = $region64
        $region63: #{tpu_custom_call.1} parent=59 // pred_region
          %s594 = sand.u32 %s171, 1
          %s595 = scalar_lea.sflag [#allocation3], %s594
          %s596 = sand.u32 %s171, 1
          %s597 = scalar_lea.vmem [#allocation2], %s596
          %599 = dma.done %s595, 16
        $region64: #{tpu_custom_call.1} parent=59 // pred_fallthru
          _
        // Predicated region
        $region65: #{tpu_custom_call.1} parent=59 // pred_check
          %p600 = pneg %p212
        $region66: #{tpu_custom_call.1} parent=59 // pred_check_branch
          %602 = sbr.rel (%p600) target = $region68
        $region67: #{tpu_custom_call.1} parent=59 // pred_region
          %s603 = sand.u32 %s27, 1
          %s604 = scalar_lea.sflag [#allocation5], %s603
          %s605 = sand.u32 %s197, 1
          %s606 = smul.addr %s605, 8
          %s607 = scalar_lea.vmem [#allocation4], %s606
          %609 = dma.done %s604, 128
        $region68: #{tpu_custom_call.1} parent=59 // pred_fallthru
          _
        // Predicated region
        $region69: #{tpu_custom_call.1} parent=59 // pred_check
          %p610 = pneg %p238
        $region70: #{tpu_custom_call.1} parent=59 // pred_check_branch
          %612 = sbr.rel (%p610) target = $region72
        $region71: #{tpu_custom_call.1} parent=59 // pred_region
          %s613 = sand.u32 %s27, 1
          %s614 = scalar_lea.sflag [#allocation5], %s613
          %s615 = sand.u32 %s223, 1
          %s616 = scalar_lea.vmem [#allocation6], %s615
          %618 = dma.done %s614, 16
        $region72: #{tpu_custom_call.1} parent=59 // pred_fallthru
          _
      $region60: #{tpu_custom_call.1} parent=5 // pred_fallthru
        _
    $region6: #{tpu_custom_call.1} parent=1 // loop_footer
      %s25 = sadd.s32 1, %s21
    $region7: #{tpu_custom_call.1} parent=1 // loop_footer_branch
      %20 = sbr.rel target = $region3
    $region8: #{tpu_custom_call.1} parent=1 // loop_exit
      _
    %619 = vsyncpa [#allocation3], 1
    %s620 = scalar_lea.sflag [#allocation3], 1
    %621 = vsyncpa %s620, 1
    %622 = vsyncpa [#allocation5], 1
    %s623 = scalar_lea.sflag [#allocation5], 1
    %624 = vsyncpa %s623, 1

</llo_original>
